<compile_context>
chip_gen: v7x
topology: tpu7x:2x2x1
jax: 0.10.0
libtpu: 0.0.40
codegen_flags: <defaults>
</compile_context>

<pallas_src>
import functools

import jax
import jax.numpy as jnp
from jax.experimental import pallas as pl
from jax.experimental.pallas import tpu as pltpu


def _round_up(x: int, m: int) -> int:
    return ((x + m - 1) // m) * m


def _cdiv(a: int, b: int) -> int:
    return (a + b - 1) // b


# ----------------------------- kernel helpers -----------------------------
def _normalize3(r0, r1, r2):
    # F.normalize(p=2, dim=1): v / max(||v||, 1e-12) == v * rsqrt(max(ss, 1e-24))
    ss = r0 * r0 + r1 * r1 + r2 * r2
    inv = jax.lax.rsqrt(jnp.maximum(ss, 1e-24))
    return r0 * inv, r1 * inv, r2 * inv


def _gram_sq(a, b, c):
    # a, b, c: 3-tuples of (sub_blk, 128) rows of M.
    # sum_ij ((M M^T - I)_{ij})^2, exploiting symmetry: 6 dots instead of 9.
    def dot(u, v):
        return u[0] * v[0] + u[1] * v[1] + u[2] * v[2]

    d00 = dot(a, a) - 1.0
    d11 = dot(b, b) - 1.0
    d22 = dot(c, c) - 1.0
    d01 = dot(a, b)
    d02 = dot(a, c)
    d12 = dot(b, c)
    return (d00 * d00 + d11 * d11 + d22 * d22
            + 2.0 * (d01 * d01 + d02 * d02 + d12 * d12))


def _plane_gram(p):
    # p: (9, sub_blk, 128) f32 — each p[i] is a full-vreg slab.
    def rows(i):
        return _normalize3(p[i], p[i + 1], p[i + 2])

    return _gram_sq(rows(0), rows(3), rows(6))


def _axis_gram(q):
    # q: (12, sub_blk, 128) f32
    def quat_axis(i):
        w, x, y, z = q[i], q[i + 1], q[i + 2], q[i + 3]
        t = 1.0 - w * w                      # negative (NaN-sqrt in torch) -> mask False
        mask = t > 1e-12                     # sqrt(t) > 1e-6  <=>  t > 1e-12
        inv = jnp.where(mask, jax.lax.rsqrt(jnp.maximum(t, 1e-12)), 0.0)
        return x * inv, y * inv, z * inv

    return _gram_sq(_normalize3(*quat_axis(0)),
                    _normalize3(*quat_axis(4)),
                    _normalize3(*quat_axis(8)))


def _mask_and_accumulate(out_ref, per, *, batch, sub_blk, nblk_per_split):
    i = pl.program_id(1)

    @pl.when(i == 0)
    def _():
        out_ref[...] = jnp.zeros_like(out_ref)

    row0 = (pl.program_id(0) * nblk_per_split + i) * sub_blk
    ridx = jax.lax.broadcasted_iota(jnp.int32, (sub_blk, 128), 0)
    lidx = jax.lax.broadcasted_iota(jnp.int32, (sub_blk, 128), 1)
    valid = ((row0 + ridx) * 128 + lidx) < batch     # padded elements would add 3/6 each
    per = jnp.where(valid, per, 0.0)

    # Fold the block down to a fixed (8, 128) slab: pure vreg-wise adds.
    partial = per.reshape(sub_blk // 8, 8, 128).sum(axis=0)
    out_ref[...] += partial[None, :, :]


# ------------------------------- kernels -----------------------------------
def _regloss_axis_kernel(planes_ref, quats_ref, out_ref, *,
                         batch: int, sub_blk: int, nblk_per_split: int):
    per = _plane_gram(planes_ref[...]) + _axis_gram(quats_ref[...])
    _mask_and_accumulate(out_ref, per, batch=batch, sub_blk=sub_blk,
                         nblk_per_split=nblk_per_split)


def _regloss_plane_kernel(planes_ref, out_ref, *,
                          batch: int, sub_blk: int, nblk_per_split: int):
    per = _plane_gram(planes_ref[...])
    _mask_and_accumulate(out_ref, per, batch=batch, sub_blk=sub_blk,
                         nblk_per_split=nblk_per_split)


# --------------------------- pure-JAX path (small B) ------------------------
def _jax_loss(plane_x, plane_y, plane_z, rot_x, rot_y, rot_z, hasaxis=True):
    def l2n(v):
        return v / jnp.maximum(jnp.linalg.norm(v, axis=1, keepdims=True), 1e-12)

    def q2axis(q):
        w = q[:, 0:1]
        xyz = q[:, 1:4]
        s = jnp.sqrt(1.0 - w * w)
        mask = s > 1e-6
        return jnp.where(mask, xyz / jnp.where(mask, s, 1.0), 0.0)

    def gram_loss(r0, r1, r2):
        M = jnp.stack([r0, r1, r2], axis=1)                      # (B, 3, 3)
        G = jnp.einsum("bij,bkj->bik", M, M) - jnp.eye(3)[None]
        return jnp.sum(G * G, axis=(1, 2))

    per = gram_loss(l2n(plane_x), l2n(plane_y), l2n(plane_z))
    if hasaxis:
        per = per + gram_loss(l2n(q2axis(rot_x)), l2n(q2axis(rot_y)),
                              l2n(q2axis(rot_z)))
    return jnp.mean(per)


# ------------------------------- wrapper ------------------------------------
def regularization_loss(plane_x, plane_y, plane_z,
                        rot_x=None, rot_y=None, rot_z=None,
                        hasaxis: bool = True,
                        *, min_pallas_batch: int = 2048,
                        max_rows_per_step: int = 1024):
    """Mean orthogonality regularization loss (matches RegularizationLoss.forward)."""
    B = plane_x.shape[0]
    f32 = jnp.float32

    # Tiny batches: one grid step of kernel work — launch overhead dominates,
    # let XLA fuse the pure-JAX path instead.
    if B < min_pallas_batch:
        return _jax_loss(plane_x, plane_y, plane_z, rot_x, rot_y, rot_z, hasaxis)

    # ---- tiling: batch -> (rows, 128), rows tiled in sub_blk-sized blocks ----
    rows_needed = _cdiv(B, 128)
    sub_blk = min(max(8, max_rows_per_step), _round_up(rows_needed, 8))
    sub_blk = _round_up(sub_blk, 8)
    nblk_total = _cdiv(rows_needed, sub_blk)

    # Leading "parallel" axis of size 2 when there is enough work: lets Mosaic
    # shard across the two TensorCores on v7x; harmless (serial) on v5e/v6e.
    num_splits = 2 if nblk_total >= 2 else 1
    nblk_per_split = _cdiv(nblk_total, num_splits)
    total_rows = num_splits * nblk_per_split * sub_blk
    b_pad = total_rows * 128

    def pack(arrs):
        # (B, k_i) components -> (sum_i k_i, total_rows, 128), component-major.
        m = jnp.concatenate([a.astype(f32).T for a in arrs], axis=0)   # (C, B)
        m = jnp.pad(m, ((0, 0), (0, b_pad - B)))
        return m.reshape(m.shape[0], total_rows, 128)

    planes = pack([plane_x, plane_y, plane_z])                         # (9,  R, 128)

    common = dict(batch=B, sub_blk=sub_blk, nblk_per_split=nblk_per_split)
    plane_spec = pl.BlockSpec((9, sub_blk, 128),
                              lambda c, i: (0, c * nblk_per_split + i, 0))

    if hasaxis:
        quats = pack([rot_x, rot_y, rot_z])                            # (12, R, 128)
        kernel = functools.partial(_regloss_axis_kernel, **common)
        in_specs = [plane_spec,
                    pl.BlockSpec((12, sub_blk, 128),
                                 lambda c, i: (0, c * nblk_per_split + i, 0))]
        args = (planes, quats)
    else:
        # separate kernel signature: do not DMA the unused quaternion inputs
        kernel = functools.partial(_regloss_plane_kernel, **common)
        in_specs = [plane_spec]
        args = (planes,)

    partials = pl.pallas_call(
        kernel,
        out_shape=jax.ShapeDtypeStruct((num_splits, 8, 128), jnp.float32),
        grid_spec=pltpu.PrefetchScalarGridSpec(
            num_scalar_prefetch=0,
            grid=(num_splits, nblk_per_split),
            in_specs=in_specs,
            out_specs=pl.BlockSpec((1, 8, 128), lambda c, i: (c, 0, 0))),
        compiler_params=pltpu.CompilerParams(
            dimension_semantics=("parallel", "arbitrary"),
            vmem_limit_bytes=40 * 1024 * 1024),
    )(*args)

    # mean over the TRUE batch size (padded elements were masked in-kernel).
    return jnp.sum(partials) * (1.0 / B)


# ----------------------------------- test ------------------------------------
if __name__ == "__main__":
    key = jax.random.PRNGKey(0)

    def make_inputs(k, B):
        k1, k2, k3, k4, k5, k6 = jax.random.split(k, 6)
        px = jax.random.normal(k1, (B, 3), jnp.float32)
        py = jax.random.normal(k2, (B, 3), jnp.float32)
        pz = jax.random.normal(k3, (B, 3), jnp.float32)

        def make_quat(kk):
            q = jax.random.normal(kk, (B, 4), jnp.float32)
            return q / jnp.linalg.norm(q, axis=1, keepdims=True)

        return px, py, pz, make_quat(k4), make_quat(k5), make_quat(k6)

    ka, kb = jax.random.split(key)

    # --- small batch, force the Pallas path (single grid step) ---
    B = 8
    px, py, pz, rx, ry, rz = make_inputs(ka, B)
    loss = regularization_loss(px, py, pz, rx, ry, rz, hasaxis=True,
                               min_pallas_batch=0)
    loss = jax.block_until_ready(loss)
    ref = _jax_loss(px, py, pz, rx, ry, rz, hasaxis=True)
    assert jnp.allclose(loss, ref, rtol=1e-5, atol=1e-5), (loss, ref)

    # hasaxis=False (separate kernel, no quaternion DMAs)
    loss_na = regularization_loss(px, py, pz, hasaxis=False,
                                  min_pallas_batch=0)
    loss_na = jax.block_until_ready(loss_na)
    ref_na = _jax_loss(px, py, pz, rx, ry, rz, hasaxis=False)
    assert jnp.allclose(loss_na, ref_na, rtol=1e-5, atol=1e-5), (loss_na, ref_na)

    # --- multi-block + 2-way split path (small rows-per-step to exercise it) ---
    B2 = 3000
    px2, py2, pz2, rx2, ry2, rz2 = make_inputs(kb, B2)
    loss2 = regularization_loss(px2, py2, pz2, rx2, ry2, rz2, hasaxis=True,
                                min_pallas_batch=0, max_rows_per_step=8)
    loss2 = jax.block_until_ready(loss2)
    ref2 = _jax_loss(px2, py2, pz2, rx2, ry2, rz2, hasaxis=True)
    assert jnp.allclose(loss2, ref2, rtol=1e-4, atol=1e-4), (loss2, ref2)

    print("KERNEL_OK")
</pallas_src>

<mosaic_0001>
module attributes {stable_mosaic.version = 11 : i64} {
  func.func @_regloss_axis_kernel(%arg0: i32, %arg1: i32, %arg2: memref<9x8x128xf32, #tpu.memory_space<vmem>>, %arg3: memref<12x8x128xf32, #tpu.memory_space<vmem>>, %arg4: memref<1x8x128xf32, #tpu.memory_space<vmem>>) attributes {dimension_semantics = [#tpu.dimension_semantics<parallel>, #tpu.dimension_semantics<arbitrary>], iteration_bounds = array<i64: 1, 1>, scalar_prefetch = 0 : i64, scratch_operands = 0 : i64, tpu.core_type = #tpu.core_type<tc>, window_params = [{transform_indices = @transform_0, window_bounds = array<i64: 9, 8, 128>}, {transform_indices = @transform_1, window_bounds = array<i64: 12, 8, 128>}, {transform_indices = @transform_2, window_bounds = array<i64: 1, 8, 128>}]} {
    %c0 = arith.constant 0 : index
    %c0_0 = arith.constant 0 : index
    %c0_1 = arith.constant 0 : index
    %0 = vector.load %arg2[%c0, %c0_0, %c0_1] : memref<9x8x128xf32, #tpu.memory_space<vmem>>, vector<9x8x128xf32>
    %1 = vector.extract_strided_slice %0 {offsets = [0, 0, 0], sizes = [1, 8, 128], strides = [1, 1, 1]} : vector<9x8x128xf32> to vector<1x8x128xf32>
    %2 = vector.shape_cast %1 : vector<1x8x128xf32> to vector<8x128xf32>
    %3 = vector.extract_strided_slice %0 {offsets = [1, 0, 0], sizes = [1, 8, 128], strides = [1, 1, 1]} : vector<9x8x128xf32> to vector<1x8x128xf32>
    %4 = vector.shape_cast %3 : vector<1x8x128xf32> to vector<8x128xf32>
    %5 = vector.extract_strided_slice %0 {offsets = [2, 0, 0], sizes = [1, 8, 128], strides = [1, 1, 1]} : vector<9x8x128xf32> to vector<1x8x128xf32>
    %6 = vector.shape_cast %5 : vector<1x8x128xf32> to vector<8x128xf32>
    %7 = arith.mulf %2, %2 : vector<8x128xf32>
    %8 = arith.mulf %4, %4 : vector<8x128xf32>
    %9 = arith.addf %7, %8 : vector<8x128xf32>
    %10 = arith.mulf %6, %6 : vector<8x128xf32>
    %11 = arith.addf %9, %10 : vector<8x128xf32>
    %cst = arith.constant 1.000000e-24 : f32
    %12 = vector.broadcast %cst : f32 to vector<8x128xf32>
    %13 = arith.maximumf %11, %12 : vector<8x128xf32>
    %14 = math.rsqrt %13 : vector<8x128xf32>
    %15 = arith.mulf %2, %14 : vector<8x128xf32>
    %16 = arith.mulf %4, %14 : vector<8x128xf32>
    %17 = arith.mulf %6, %14 : vector<8x128xf32>
    %18 = vector.extract_strided_slice %0 {offsets = [3, 0, 0], sizes = [1, 8, 128], strides = [1, 1, 1]} : vector<9x8x128xf32> to vector<1x8x128xf32>
    %19 = vector.shape_cast %18 : vector<1x8x128xf32> to vector<8x128xf32>
    %20 = vector.extract_strided_slice %0 {offsets = [4, 0, 0], sizes = [1, 8, 128], strides = [1, 1, 1]} : vector<9x8x128xf32> to vector<1x8x128xf32>
    %21 = vector.shape_cast %20 : vector<1x8x128xf32> to vector<8x128xf32>
    %22 = vector.extract_strided_slice %0 {offsets = [5, 0, 0], sizes = [1, 8, 128], strides = [1, 1, 1]} : vector<9x8x128xf32> to vector<1x8x128xf32>
    %23 = vector.shape_cast %22 : vector<1x8x128xf32> to vector<8x128xf32>
    %24 = arith.mulf %19, %19 : vector<8x128xf32>
    %25 = arith.mulf %21, %21 : vector<8x128xf32>
    %26 = arith.addf %24, %25 : vector<8x128xf32>
    %27 = arith.mulf %23, %23 : vector<8x128xf32>
    %28 = arith.addf %26, %27 : vector<8x128xf32>
    %cst_2 = arith.constant 1.000000e-24 : f32
    %29 = vector.broadcast %cst_2 : f32 to vector<8x128xf32>
    %30 = arith.maximumf %28, %29 : vector<8x128xf32>
    %31 = math.rsqrt %30 : vector<8x128xf32>
    %32 = arith.mulf %19, %31 : vector<8x128xf32>
    %33 = arith.mulf %21, %31 : vector<8x128xf32>
    %34 = arith.mulf %23, %31 : vector<8x128xf32>
    %35 = vector.extract_strided_slice %0 {offsets = [6, 0, 0], sizes = [1, 8, 128], strides = [1, 1, 1]} : vector<9x8x128xf32> to vector<1x8x128xf32>
    %36 = vector.shape_cast %35 : vector<1x8x128xf32> to vector<8x128xf32>
    %37 = vector.extract_strided_slice %0 {offsets = [7, 0, 0], sizes = [1, 8, 128], strides = [1, 1, 1]} : vector<9x8x128xf32> to vector<1x8x128xf32>
    %38 = vector.shape_cast %37 : vector<1x8x128xf32> to vector<8x128xf32>
    %39 = vector.extract_strided_slice %0 {offsets = [8, 0, 0], sizes = [1, 8, 128], strides = [1, 1, 1]} : vector<9x8x128xf32> to vector<1x8x128xf32>
    %40 = vector.shape_cast %39 : vector<1x8x128xf32> to vector<8x128xf32>
    %41 = arith.mulf %36, %36 : vector<8x128xf32>
    %42 = arith.mulf %38, %38 : vector<8x128xf32>
    %43 = arith.addf %41, %42 : vector<8x128xf32>
    %44 = arith.mulf %40, %40 : vector<8x128xf32>
    %45 = arith.addf %43, %44 : vector<8x128xf32>
    %cst_3 = arith.constant 1.000000e-24 : f32
    %46 = vector.broadcast %cst_3 : f32 to vector<8x128xf32>
    %47 = arith.maximumf %45, %46 : vector<8x128xf32>
    %48 = math.rsqrt %47 : vector<8x128xf32>
    %49 = arith.mulf %36, %48 : vector<8x128xf32>
    %50 = arith.mulf %38, %48 : vector<8x128xf32>
    %51 = arith.mulf %40, %48 : vector<8x128xf32>
    %52 = arith.mulf %15, %15 : vector<8x128xf32>
    %53 = arith.mulf %16, %16 : vector<8x128xf32>
    %54 = arith.addf %52, %53 : vector<8x128xf32>
    %55 = arith.mulf %17, %17 : vector<8x128xf32>
    %56 = arith.addf %54, %55 : vector<8x128xf32>
    %cst_4 = arith.constant 1.000000e+00 : f32
    %57 = vector.broadcast %cst_4 : f32 to vector<8x128xf32>
    %58 = arith.subf %56, %57 : vector<8x128xf32>
    %59 = arith.mulf %32, %32 : vector<8x128xf32>
    %60 = arith.mulf %33, %33 : vector<8x128xf32>
    %61 = arith.addf %59, %60 : vector<8x128xf32>
    %62 = arith.mulf %34, %34 : vector<8x128xf32>
    %63 = arith.addf %61, %62 : vector<8x128xf32>
    %cst_5 = arith.constant 1.000000e+00 : f32
    %64 = vector.broadcast %cst_5 : f32 to vector<8x128xf32>
    %65 = arith.subf %63, %64 : vector<8x128xf32>
    %66 = arith.mulf %49, %49 : vector<8x128xf32>
    %67 = arith.mulf %50, %50 : vector<8x128xf32>
    %68 = arith.addf %66, %67 : vector<8x128xf32>
    %69 = arith.mulf %51, %51 : vector<8x128xf32>
    %70 = arith.addf %68, %69 : vector<8x128xf32>
    %cst_6 = arith.constant 1.000000e+00 : f32
    %71 = vector.broadcast %cst_6 : f32 to vector<8x128xf32>
    %72 = arith.subf %70, %71 : vector<8x128xf32>
    %73 = arith.mulf %15, %32 : vector<8x128xf32>
    %74 = arith.mulf %16, %33 : vector<8x128xf32>
    %75 = arith.addf %73, %74 : vector<8x128xf32>
    %76 = arith.mulf %17, %34 : vector<8x128xf32>
    %77 = arith.addf %75, %76 : vector<8x128xf32>
    %78 = arith.mulf %15, %49 : vector<8x128xf32>
    %79 = arith.mulf %16, %50 : vector<8x128xf32>
    %80 = arith.addf %78, %79 : vector<8x128xf32>
    %81 = arith.mulf %17, %51 : vector<8x128xf32>
    %82 = arith.addf %80, %81 : vector<8x128xf32>
    %83 = arith.mulf %32, %49 : vector<8x128xf32>
    %84 = arith.mulf %33, %50 : vector<8x128xf32>
    %85 = arith.addf %83, %84 : vector<8x128xf32>
    %86 = arith.mulf %34, %51 : vector<8x128xf32>
    %87 = arith.addf %85, %86 : vector<8x128xf32>
    %88 = arith.mulf %58, %58 : vector<8x128xf32>
    %89 = arith.mulf %65, %65 : vector<8x128xf32>
    %90 = arith.addf %88, %89 : vector<8x128xf32>
    %91 = arith.mulf %72, %72 : vector<8x128xf32>
    %92 = arith.addf %90, %91 : vector<8x128xf32>
    %93 = arith.mulf %77, %77 : vector<8x128xf32>
    %94 = arith.mulf %82, %82 : vector<8x128xf32>
    %95 = arith.addf %93, %94 : vector<8x128xf32>
    %96 = arith.mulf %87, %87 : vector<8x128xf32>
    %97 = arith.addf %95, %96 : vector<8x128xf32>
    %cst_7 = arith.constant 2.000000e+00 : f32
    %98 = vector.broadcast %cst_7 : f32 to vector<8x128xf32>
    %99 = arith.mulf %98, %97 : vector<8x128xf32>
    %100 = arith.addf %92, %99 : vector<8x128xf32>
    %c0_8 = arith.constant 0 : index
    %c0_9 = arith.constant 0 : index
    %c0_10 = arith.constant 0 : index
    %101 = vector.load %arg3[%c0_8, %c0_9, %c0_10] : memref<12x8x128xf32, #tpu.memory_space<vmem>>, vector<12x8x128xf32>
    %102 = vector.extract_strided_slice %101 {offsets = [0, 0, 0], sizes = [1, 8, 128], strides = [1, 1, 1]} : vector<12x8x128xf32> to vector<1x8x128xf32>
    %103 = vector.shape_cast %102 : vector<1x8x128xf32> to vector<8x128xf32>
    %104 = vector.extract_strided_slice %101 {offsets = [1, 0, 0], sizes = [1, 8, 128], strides = [1, 1, 1]} : vector<12x8x128xf32> to vector<1x8x128xf32>
    %105 = vector.shape_cast %104 : vector<1x8x128xf32> to vector<8x128xf32>
    %106 = vector.extract_strided_slice %101 {offsets = [2, 0, 0], sizes = [1, 8, 128], strides = [1, 1, 1]} : vector<12x8x128xf32> to vector<1x8x128xf32>
    %107 = vector.shape_cast %106 : vector<1x8x128xf32> to vector<8x128xf32>
    %108 = vector.extract_strided_slice %101 {offsets = [3, 0, 0], sizes = [1, 8, 128], strides = [1, 1, 1]} : vector<12x8x128xf32> to vector<1x8x128xf32>
    %109 = vector.shape_cast %108 : vector<1x8x128xf32> to vector<8x128xf32>
    %110 = arith.mulf %103, %103 : vector<8x128xf32>
    %cst_11 = arith.constant 1.000000e+00 : f32
    %111 = vector.broadcast %cst_11 : f32 to vector<8x128xf32>
    %112 = arith.subf %111, %110 : vector<8x128xf32>
    %cst_12 = arith.constant 9.99999996E-13 : f32
    %113 = vector.broadcast %cst_12 : f32 to vector<8x128xf32>
    %114 = arith.cmpf ogt, %112, %113 : vector<8x128xf32>
    %cst_13 = arith.constant 9.99999996E-13 : f32
    %115 = vector.broadcast %cst_13 : f32 to vector<8x128xf32>
    %116 = arith.maximumf %112, %115 : vector<8x128xf32>
    %117 = math.rsqrt %116 : vector<8x128xf32>
    %cst_14 = arith.constant 0.000000e+00 : f32
    %118 = vector.broadcast %cst_14 : f32 to vector<8x128xf32>
    %119 = arith.select %114, %117, %118 : vector<8x128xi1>, vector<8x128xf32>
    %120 = arith.mulf %105, %119 : vector<8x128xf32>
    %121 = arith.mulf %107, %119 : vector<8x128xf32>
    %122 = arith.mulf %109, %119 : vector<8x128xf32>
    %123 = arith.mulf %120, %120 : vector<8x128xf32>
    %124 = arith.mulf %121, %121 : vector<8x128xf32>
    %125 = arith.addf %123, %124 : vector<8x128xf32>
    %126 = arith.mulf %122, %122 : vector<8x128xf32>
    %127 = arith.addf %125, %126 : vector<8x128xf32>
    %cst_15 = arith.constant 1.000000e-24 : f32
    %128 = vector.broadcast %cst_15 : f32 to vector<8x128xf32>
    %129 = arith.maximumf %127, %128 : vector<8x128xf32>
    %130 = math.rsqrt %129 : vector<8x128xf32>
    %131 = arith.mulf %120, %130 : vector<8x128xf32>
    %132 = arith.mulf %121, %130 : vector<8x128xf32>
    %133 = arith.mulf %122, %130 : vector<8x128xf32>
    %134 = vector.extract_strided_slice %101 {offsets = [4, 0, 0], sizes = [1, 8, 128], strides = [1, 1, 1]} : vector<12x8x128xf32> to vector<1x8x128xf32>
    %135 = vector.shape_cast %134 : vector<1x8x128xf32> to vector<8x128xf32>
    %136 = vector.extract_strided_slice %101 {offsets = [5, 0, 0], sizes = [1, 8, 128], strides = [1, 1, 1]} : vector<12x8x128xf32> to vector<1x8x128xf32>
    %137 = vector.shape_cast %136 : vector<1x8x128xf32> to vector<8x128xf32>
    %138 = vector.extract_strided_slice %101 {offsets = [6, 0, 0], sizes = [1, 8, 128], strides = [1, 1, 1]} : vector<12x8x128xf32> to vector<1x8x128xf32>
    %139 = vector.shape_cast %138 : vector<1x8x128xf32> to vector<8x128xf32>
    %140 = vector.extract_strided_slice %101 {offsets = [7, 0, 0], sizes = [1, 8, 128], strides = [1, 1, 1]} : vector<12x8x128xf32> to vector<1x8x128xf32>
    %141 = vector.shape_cast %140 : vector<1x8x128xf32> to vector<8x128xf32>
    %142 = arith.mulf %135, %135 : vector<8x128xf32>
    %cst_16 = arith.constant 1.000000e+00 : f32
    %143 = vector.broadcast %cst_16 : f32 to vector<8x128xf32>
    %144 = arith.subf %143, %142 : vector<8x128xf32>
    %cst_17 = arith.constant 9.99999996E-13 : f32
    %145 = vector.broadcast %cst_17 : f32 to vector<8x128xf32>
    %146 = arith.cmpf ogt, %144, %145 : vector<8x128xf32>
    %cst_18 = arith.constant 9.99999996E-13 : f32
    %147 = vector.broadcast %cst_18 : f32 to vector<8x128xf32>
    %148 = arith.maximumf %144, %147 : vector<8x128xf32>
    %149 = math.rsqrt %148 : vector<8x128xf32>
    %cst_19 = arith.constant 0.000000e+00 : f32
    %150 = vector.broadcast %cst_19 : f32 to vector<8x128xf32>
    %151 = arith.select %146, %149, %150 : vector<8x128xi1>, vector<8x128xf32>
    %152 = arith.mulf %137, %151 : vector<8x128xf32>
    %153 = arith.mulf %139, %151 : vector<8x128xf32>
    %154 = arith.mulf %141, %151 : vector<8x128xf32>
    %155 = arith.mulf %152, %152 : vector<8x128xf32>
    %156 = arith.mulf %153, %153 : vector<8x128xf32>
    %157 = arith.addf %155, %156 : vector<8x128xf32>
    %158 = arith.mulf %154, %154 : vector<8x128xf32>
    %159 = arith.addf %157, %158 : vector<8x128xf32>
    %cst_20 = arith.constant 1.000000e-24 : f32
    %160 = vector.broadcast %cst_20 : f32 to vector<8x128xf32>
    %161 = arith.maximumf %159, %160 : vector<8x128xf32>
    %162 = math.rsqrt %161 : vector<8x128xf32>
    %163 = arith.mulf %152, %162 : vector<8x128xf32>
    %164 = arith.mulf %153, %162 : vector<8x128xf32>
    %165 = arith.mulf %154, %162 : vector<8x128xf32>
    %166 = vector.extract_strided_slice %101 {offsets = [8, 0, 0], sizes = [1, 8, 128], strides = [1, 1, 1]} : vector<12x8x128xf32> to vector<1x8x128xf32>
    %167 = vector.shape_cast %166 : vector<1x8x128xf32> to vector<8x128xf32>
    %168 = vector.extract_strided_slice %101 {offsets = [9, 0, 0], sizes = [1, 8, 128], strides = [1, 1, 1]} : vector<12x8x128xf32> to vector<1x8x128xf32>
    %169 = vector.shape_cast %168 : vector<1x8x128xf32> to vector<8x128xf32>
    %170 = vector.extract_strided_slice %101 {offsets = [10, 0, 0], sizes = [1, 8, 128], strides = [1, 1, 1]} : vector<12x8x128xf32> to vector<1x8x128xf32>
    %171 = vector.shape_cast %170 : vector<1x8x128xf32> to vector<8x128xf32>
    %172 = vector.extract_strided_slice %101 {offsets = [11, 0, 0], sizes = [1, 8, 128], strides = [1, 1, 1]} : vector<12x8x128xf32> to vector<1x8x128xf32>
    %173 = vector.shape_cast %172 : vector<1x8x128xf32> to vector<8x128xf32>
    %174 = arith.mulf %167, %167 : vector<8x128xf32>
    %cst_21 = arith.constant 1.000000e+00 : f32
    %175 = vector.broadcast %cst_21 : f32 to vector<8x128xf32>
    %176 = arith.subf %175, %174 : vector<8x128xf32>
    %cst_22 = arith.constant 9.99999996E-13 : f32
    %177 = vector.broadcast %cst_22 : f32 to vector<8x128xf32>
    %178 = arith.cmpf ogt, %176, %177 : vector<8x128xf32>
    %cst_23 = arith.constant 9.99999996E-13 : f32
    %179 = vector.broadcast %cst_23 : f32 to vector<8x128xf32>
    %180 = arith.maximumf %176, %179 : vector<8x128xf32>
    %181 = math.rsqrt %180 : vector<8x128xf32>
    %cst_24 = arith.constant 0.000000e+00 : f32
    %182 = vector.broadcast %cst_24 : f32 to vector<8x128xf32>
    %183 = arith.select %178, %181, %182 : vector<8x128xi1>, vector<8x128xf32>
    %184 = arith.mulf %169, %183 : vector<8x128xf32>
    %185 = arith.mulf %171, %183 : vector<8x128xf32>
    %186 = arith.mulf %173, %183 : vector<8x128xf32>
    %187 = arith.mulf %184, %184 : vector<8x128xf32>
    %188 = arith.mulf %185, %185 : vector<8x128xf32>
    %189 = arith.addf %187, %188 : vector<8x128xf32>
    %190 = arith.mulf %186, %186 : vector<8x128xf32>
    %191 = arith.addf %189, %190 : vector<8x128xf32>
    %cst_25 = arith.constant 1.000000e-24 : f32
    %192 = vector.broadcast %cst_25 : f32 to vector<8x128xf32>
    %193 = arith.maximumf %191, %192 : vector<8x128xf32>
    %194 = math.rsqrt %193 : vector<8x128xf32>
    %195 = arith.mulf %184, %194 : vector<8x128xf32>
    %196 = arith.mulf %185, %194 : vector<8x128xf32>
    %197 = arith.mulf %186, %194 : vector<8x128xf32>
    %198 = arith.mulf %131, %131 : vector<8x128xf32>
    %199 = arith.mulf %132, %132 : vector<8x128xf32>
    %200 = arith.addf %198, %199 : vector<8x128xf32>
    %201 = arith.mulf %133, %133 : vector<8x128xf32>
    %202 = arith.addf %200, %201 : vector<8x128xf32>
    %cst_26 = arith.constant 1.000000e+00 : f32
    %203 = vector.broadcast %cst_26 : f32 to vector<8x128xf32>
    %204 = arith.subf %202, %203 : vector<8x128xf32>
    %205 = arith.mulf %163, %163 : vector<8x128xf32>
    %206 = arith.mulf %164, %164 : vector<8x128xf32>
    %207 = arith.addf %205, %206 : vector<8x128xf32>
    %208 = arith.mulf %165, %165 : vector<8x128xf32>
    %209 = arith.addf %207, %208 : vector<8x128xf32>
    %cst_27 = arith.constant 1.000000e+00 : f32
    %210 = vector.broadcast %cst_27 : f32 to vector<8x128xf32>
    %211 = arith.subf %209, %210 : vector<8x128xf32>
    %212 = arith.mulf %195, %195 : vector<8x128xf32>
    %213 = arith.mulf %196, %196 : vector<8x128xf32>
    %214 = arith.addf %212, %213 : vector<8x128xf32>
    %215 = arith.mulf %197, %197 : vector<8x128xf32>
    %216 = arith.addf %214, %215 : vector<8x128xf32>
    %cst_28 = arith.constant 1.000000e+00 : f32
    %217 = vector.broadcast %cst_28 : f32 to vector<8x128xf32>
    %218 = arith.subf %216, %217 : vector<8x128xf32>
    %219 = arith.mulf %131, %163 : vector<8x128xf32>
    %220 = arith.mulf %132, %164 : vector<8x128xf32>
    %221 = arith.addf %219, %220 : vector<8x128xf32>
    %222 = arith.mulf %133, %165 : vector<8x128xf32>
    %223 = arith.addf %221, %222 : vector<8x128xf32>
    %224 = arith.mulf %131, %195 : vector<8x128xf32>
    %225 = arith.mulf %132, %196 : vector<8x128xf32>
    %226 = arith.addf %224, %225 : vector<8x128xf32>
    %227 = arith.mulf %133, %197 : vector<8x128xf32>
    %228 = arith.addf %226, %227 : vector<8x128xf32>
    %229 = arith.mulf %163, %195 : vector<8x128xf32>
    %230 = arith.mulf %164, %196 : vector<8x128xf32>
    %231 = arith.addf %229, %230 : vector<8x128xf32>
    %232 = arith.mulf %165, %197 : vector<8x128xf32>
    %233 = arith.addf %231, %232 : vector<8x128xf32>
    %234 = arith.mulf %204, %204 : vector<8x128xf32>
    %235 = arith.mulf %211, %211 : vector<8x128xf32>
    %236 = arith.addf %234, %235 : vector<8x128xf32>
    %237 = arith.mulf %218, %218 : vector<8x128xf32>
    %238 = arith.addf %236, %237 : vector<8x128xf32>
    %239 = arith.mulf %223, %223 : vector<8x128xf32>
    %240 = arith.mulf %228, %228 : vector<8x128xf32>
    %241 = arith.addf %239, %240 : vector<8x128xf32>
    %242 = arith.mulf %233, %233 : vector<8x128xf32>
    %243 = arith.addf %241, %242 : vector<8x128xf32>
    %cst_29 = arith.constant 2.000000e+00 : f32
    %244 = vector.broadcast %cst_29 : f32 to vector<8x128xf32>
    %245 = arith.mulf %244, %243 : vector<8x128xf32>
    %246 = arith.addf %238, %245 : vector<8x128xf32>
    %247 = arith.addf %100, %246 : vector<8x128xf32>
    %c0_i32 = arith.constant 0 : i32
    %248 = arith.cmpi eq, %arg1, %c0_i32 : i32
    %249 = arith.extui %248 : i1 to i32
    %c0_i32_30 = arith.constant 0 : i32
    %250 = arith.cmpi ne, %249, %c0_i32_30 : i32
    scf.if %250 {
      %cst_40 = arith.constant 0.000000e+00 : f32
      %271 = vector.broadcast %cst_40 : f32 to vector<1x8x128xf32>
      %c0_41 = arith.constant 0 : index
      %c0_42 = arith.constant 0 : index
      %c0_43 = arith.constant 0 : index
      %272 = vector.load %arg4[%c0_41, %c0_42, %c0_43] : memref<1x8x128xf32, #tpu.memory_space<vmem>>, vector<1x8x128xf32>
      tpu.vector_store %arg4[%c0_41, %c0_42, %c0_43], %271 {strides = array<i32>} : memref<1x8x128xf32, #tpu.memory_space<vmem>>, vector<1x8x128xf32>,
    } else {
    }
    %c1_i32 = arith.constant 1 : i32
    %251 = arith.muli %arg0, %c1_i32 : i32
    %252 = arith.addi %251, %arg1 : i32
    %c8_i32 = arith.constant 8 : i32
    %253 = arith.muli %252, %c8_i32 : i32
    %254 = tpu.iota {dimensions = array<i32: 0>} : vector<8x128xi32>
    %255 = tpu.iota {dimensions = array<i32: 1>} : vector<8x128xi32>
    %256 = vector.broadcast %253 : i32 to vector<8x128xi32>
    %257 = arith.addi %256, %254 : vector<8x128xi32>
    %c128_i32 = arith.constant 128 : i32
    %258 = vector.broadcast %c128_i32 : i32 to vector<8x128xi32>
    %259 = arith.muli %257, %258 : vector<8x128xi32>
    %260 = arith.addi %259, %255 : vector<8x128xi32>
    %c8_i32_31 = arith.constant 8 : i32
    %261 = vector.broadcast %c8_i32_31 : i32 to vector<8x128xi32>
    %262 = arith.cmpi slt, %260, %261 : vector<8x128xi32>
    %cst_32 = arith.constant 0.000000e+00 : f32
    %263 = vector.broadcast %cst_32 : f32 to vector<8x128xf32>
    %264 = arith.select %262, %247, %263 : vector<8x128xi1>, vector<8x128xf32>
    %265 = vector.shape_cast %264 : vector<8x128xf32> to vector<1x8x128xf32>
    %cst_33 = arith.constant dense<0.000000e+00> : vector<8x128xf32>
    %266 = vector.multi_reduction <add>, %265, %cst_33 [0] : vector<1x8x128xf32> to vector<8x128xf32>
    %c0_34 = arith.constant 0 : index
    %c0_35 = arith.constant 0 : index
    %c0_36 = arith.constant 0 : index
    %267 = vector.load %arg4[%c0_34, %c0_35, %c0_36] : memref<1x8x128xf32, #tpu.memory_space<vmem>>, vector<1x8x128xf32>
    %268 = vector.shape_cast %266 : vector<8x128xf32> to vector<1x8x128xf32>
    %269 = arith.addf %267, %268 : vector<1x8x128xf32>
    %c0_37 = arith.constant 0 : index
    %c0_38 = arith.constant 0 : index
    %c0_39 = arith.constant 0 : index
    %270 = vector.load %arg4[%c0_37, %c0_38, %c0_39] : memref<1x8x128xf32, #tpu.memory_space<vmem>>, vector<1x8x128xf32>
    tpu.vector_store %arg4[%c0_37, %c0_38, %c0_39], %269 {strides = array<i32>} : memref<1x8x128xf32, #tpu.memory_space<vmem>>, vector<1x8x128xf32>,
    return
  }
  func.func @transform_0(%arg0: i32, %arg1: i32) -> (i32, i32, i32) {
    %c1_i32 = arith.constant 1 : i32
    %0 = arith.muli %arg0, %c1_i32 : i32
    %1 = arith.addi %0, %arg1 : i32
    %c0_i32 = arith.constant 0 : i32
    %c0_i32_0 = arith.constant 0 : i32
    %c0_i32_1 = arith.constant 0 : i32
    return %c0_i32, %1, %c0_i32_0 : i32, i32, i32
  }
  func.func @transform_1(%arg0: i32, %arg1: i32) -> (i32, i32, i32) {
    %c1_i32 = arith.constant 1 : i32
    %0 = arith.muli %arg0, %c1_i32 : i32
    %1 = arith.addi %0, %arg1 : i32
    %c0_i32 = arith.constant 0 : i32
    %c0_i32_0 = arith.constant 0 : i32
    %c0_i32_1 = arith.constant 0 : i32
    return %c0_i32, %1, %c0_i32_0 : i32, i32, i32
  }
  func.func @transform_2(%arg0: i32, %arg1: i32) -> (i32, i32, i32) {
    %c0_i32 = arith.constant 0 : i32
    %c0_i32_0 = arith.constant 0 : i32
    %c0_i32_1 = arith.constant 0 : i32
    return %arg0, %c0_i32, %c0_i32_0 : i32, i32, i32
  }
}

</mosaic_0001>

<llo_original>
// kernel: tpu_custom_call.1
$region0: #{tpu_custom_call.1}
  #allocation0 [shape = 'u32[]', space=smem, size = 0x4, offset = 0x4, fixed_abs, tag = 'smem constant byte address 0x4 - core index']
  #allocation1 [shape = 'u32[144,128]{1,0:T(1,128)}', space=vmem, size = 0x12000, scoped, tag = 'internal scratch']
  %s0 = inlined_call_operand.hbm [shape: f32[9,8,128], index: 0, kind: input, shape index: {}]
  %s1 = inlined_call_operand.hbm [shape: f32[12,8,128], index: 1, kind: input, shape index: {}]
  %s2 = inlined_call_operand.hbm [shape: f32[1,8,128], index: 2, kind: output, shape index: {}]
  %s3 = sld [smem:[#allocation0]]
  $region30: #{tpu_custom_call.1} parent=0
    _
  %s5 = ssub.s32 1, %s3
  %s6 = scalar_select 0, %s5, %s3
  $region1: #{tpu_custom_call.1} parent=0
    #allocation2 [shape = 'u8[36864]{0}', space=vmem, size = 0x9000, scoped, tag = 'input window, operand 0, single buffered']
    #allocation3 [shape = 's32[1]{0}', space=sflag, size = 0x4, scoped, tag = 'scoped memory for tpu_custom_call.1']
    #allocation4 [shape = 's32[1]{0}', space=sflag, size = 0x4, scoped, tag = 'scoped memory for tpu_custom_call.1']
    #allocation5 [shape = 'u8[49152]{0}', space=vmem, size = 0xc000, scoped, tag = 'input window, operand 1, single buffered']
    #allocation6 [shape = 's32[1]{0}', space=sflag, size = 0x4, scoped, tag = 'scoped memory for tpu_custom_call.1']
    #allocation7 [shape = 'u8[4096]{0}', space=vmem, size = 0x1000, scoped, tag = 'output window, operand 0, single buffered']
    %7 = vsyncpa [#allocation3], 0
    %8 = vsyncpa [#allocation6], 0
    %9 = vsyncpa [#allocation4], 0
    // Predicated region
    $region2: #{tpu_custom_call.1} parent=1 // pred_check
      _
    $region3: #{tpu_custom_call.1} parent=1 // pred_check_branch
      %11 = sbr.rel (0) target = $region5
    $region4: #{tpu_custom_call.1} parent=1 // pred_region
      %s12 = sadd.s32 0, 0
      %s14 = ssub.s32 1152, 1152
      %15 = vsyncadd [#allocation3], %s14
      %s16 = smul.addr %s12, 128
      %s17 = scalar_lea.hbm %s0, %s16
      %s18 = sshll.u32 [#allocation2], 4
      %s19 = int_to_ptr.vmem [resolvable:$true] %s18
      %24 = dma.hbm_to_vmem [thread:$0]  %s17, 1152, %s19, [#allocation3], 128, 128, 8
    $region5: #{tpu_custom_call.1} parent=1 // pred_fallthru
      _
    // Predicated region
    $region6: #{tpu_custom_call.1} parent=1 // pred_check
      _
    $region7: #{tpu_custom_call.1} parent=1 // pred_check_branch
      %26 = sbr.rel (0) target = $region9
    $region8: #{tpu_custom_call.1} parent=1 // pred_region
      %s27 = sadd.s32 0, 0
      %s29 = ssub.s32 1536, 1536
      %30 = vsyncadd [#allocation6], %s29
      %s31 = smul.addr %s27, 128
      %s32 = scalar_lea.hbm %s1, %s31
      %s33 = sshll.u32 [#allocation5], 4
      %s34 = int_to_ptr.vmem [resolvable:$true] %s33
      %39 = dma.hbm_to_vmem [thread:$0]  %s32, 1536, %s34, [#allocation6], 128, 128, 8
    $region9: #{tpu_custom_call.1} parent=1 // pred_fallthru
      _
    // Predicated region
    $region10: #{tpu_custom_call.1} parent=1 // pred_check
      _
    $region11: #{tpu_custom_call.1} parent=1 // pred_check_branch
      %41 = sbr.rel (0) target = $region13
    $region12: #{tpu_custom_call.1} parent=1 // pred_region
      %42 = dma.done [#allocation3], 1152
    $region13: #{tpu_custom_call.1} parent=1 // pred_fallthru
      _
    // Predicated region
    $region14: #{tpu_custom_call.1} parent=1 // pred_check
      _
    $region15: #{tpu_custom_call.1} parent=1 // pred_check_branch
      %44 = sbr.rel (0) target = $region17
    $region16: #{tpu_custom_call.1} parent=1 // pred_region
      %45 = dma.done [#allocation6], 1536
    $region17: #{tpu_custom_call.1} parent=1 // pred_fallthru
      _
    %s46 = sadd.s32 0, 0
    %s47 = sadd.s32 0, 0
    %v48 = vld [vmem:[#allocation2] sm:$0xff]
    %v49 = vld [vmem:[#allocation2 + $0x8] sm:$0xff]
    %v50 = vld [vmem:[#allocation2 + $0x10] sm:$0xff]
    %v51 = vld [vmem:[#allocation2 + $0x18] sm:$0xff]
    %v52 = vld [vmem:[#allocation2 + $0x20] sm:$0xff]
    %v53 = vld [vmem:[#allocation2 + $0x28] sm:$0xff]
    %v54 = vld [vmem:[#allocation2 + $0x30] sm:$0xff]
    %v55 = vld [vmem:[#allocation2 + $0x38] sm:$0xff]
    %v56 = vld [vmem:[#allocation2 + $0x40] sm:$0xff]
    %v57 = vmul.f32 %v48, %v48
    %v58 = vmul.f32 %v49, %v49
    %v59 = vadd.f32 %v57, %v58
    %v60 = vmul.f32 %v50, %v50
    %v61 = vadd.f32 %v59, %v60
    %v62 = vmax.f32 %v61, 1e-24
    %v63 = vrsqrt.pop %v62
    %v64 = vmul.f32 %v48, %v63
    %v65 = vmul.f32 %v49, %v63
    %v66 = vmul.f32 %v50, %v63
    %v67 = vmul.f32 %v51, %v51
    %v68 = vmul.f32 %v52, %v52
    %v69 = vadd.f32 %v67, %v68
    %v70 = vmul.f32 %v53, %v53
    %v71 = vadd.f32 %v69, %v70
    %v72 = vmax.f32 %v71, 1e-24
    %v73 = vrsqrt.pop %v72
    %v74 = vmul.f32 %v51, %v73
    %v75 = vmul.f32 %v52, %v73
    %v76 = vmul.f32 %v53, %v73
    %v77 = vmul.f32 %v54, %v54
    %v78 = vmul.f32 %v55, %v55
    %v79 = vadd.f32 %v77, %v78
    %v80 = vmul.f32 %v56, %v56
    %v81 = vadd.f32 %v79, %v80
    %v82 = vmax.f32 %v81, 1e-24
    %v83 = vrsqrt.pop %v82
    %v84 = vmul.f32 %v54, %v83
    %v85 = vmul.f32 %v55, %v83
    %v86 = vmul.f32 %v56, %v83
    %v87 = vmul.f32 %v64, %v64
    %v88 = vmul.f32 %v65, %v65
    %v89 = vadd.f32 %v87, %v88
    %v90 = vmul.f32 %v66, %v66
    %v91 = vadd.f32 %v89, %v90
    %v92 = vsub.f32 %v91, 1.0
    %v93 = vmul.f32 %v74, %v74
    %v94 = vmul.f32 %v75, %v75
    %v95 = vadd.f32 %v93, %v94
    %v96 = vmul.f32 %v76, %v76
    %v97 = vadd.f32 %v95, %v96
    %v98 = vsub.f32 %v97, 1.0
    %v99 = vmul.f32 %v84, %v84
    %v100 = vmul.f32 %v85, %v85
    %v101 = vadd.f32 %v99, %v100
    %v102 = vmul.f32 %v86, %v86
    %v103 = vadd.f32 %v101, %v102
    %v104 = vsub.f32 %v103, 1.0
    %v105 = vmul.f32 %v64, %v74
    %v106 = vmul.f32 %v65, %v75
    %v107 = vadd.f32 %v105, %v106
    %v108 = vmul.f32 %v66, %v76
    %v109 = vadd.f32 %v107, %v108
    %v110 = vmul.f32 %v64, %v84
    %v111 = vmul.f32 %v65, %v85
    %v112 = vadd.f32 %v110, %v111
    %v113 = vmul.f32 %v66, %v86
    %v114 = vadd.f32 %v112, %v113
    %v115 = vmul.f32 %v74, %v84
    %v116 = vmul.f32 %v75, %v85
    %v117 = vadd.f32 %v115, %v116
    %v118 = vmul.f32 %v76, %v86
    %v119 = vadd.f32 %v117, %v118
    %v120 = vmul.f32 %v92, %v92
    %v121 = vmul.f32 %v98, %v98
    %v122 = vadd.f32 %v120, %v121
    %v123 = vmul.f32 %v104, %v104
    %v124 = vadd.f32 %v122, %v123
    %v125 = vmul.f32 %v109, %v109
    %v126 = vmul.f32 %v114, %v114
    %v127 = vadd.f32 %v125, %v126
    %v128 = vmul.f32 %v119, %v119
    %v129 = vadd.f32 %v127, %v128
    %v130 = vmul.f32 %v129, 2.0
    %v131 = vadd.f32 %v124, %v130
    %v132 = vld [vmem:[#allocation5] sm:$0xff]
    %v133 = vld [vmem:[#allocation5 + $0x8] sm:$0xff]
    %v134 = vld [vmem:[#allocation5 + $0x10] sm:$0xff]
    %v135 = vld [vmem:[#allocation5 + $0x18] sm:$0xff]
    %v136 = vld [vmem:[#allocation5 + $0x20] sm:$0xff]
    %v137 = vld [vmem:[#allocation5 + $0x28] sm:$0xff]
    %v138 = vld [vmem:[#allocation5 + $0x30] sm:$0xff]
    %v139 = vld [vmem:[#allocation5 + $0x38] sm:$0xff]
    %v140 = vld [vmem:[#allocation5 + $0x40] sm:$0xff]
    %v141 = vld [vmem:[#allocation5 + $0x48] sm:$0xff]
    %v142 = vld [vmem:[#allocation5 + $0x50] sm:$0xff]
    %v143 = vld [vmem:[#allocation5 + $0x58] sm:$0xff]
    %v144 = vmul.f32 %v132, %v132
    %v145 = vsub.f32 1.0, %v144
    %vm146 = vcmp.gt.f32.partialorder %v145, 1e-12
    %v147 = vmax.f32 %v145, 1e-12
    %v148 = vrsqrt.pop %v147
    %v149 = vsel %vm146, %v148, 0.0
    %v150 = vmul.f32 %v133, %v149
    %v151 = vmul.f32 %v134, %v149
    %v152 = vmul.f32 %v135, %v149
    %v153 = vmul.f32 %v150, %v150
    %v154 = vmul.f32 %v151, %v151
    %v155 = vadd.f32 %v153, %v154
    %v156 = vmul.f32 %v152, %v152
    %v157 = vadd.f32 %v155, %v156
    %v158 = vmax.f32 %v157, 1e-24
    %v159 = vrsqrt.pop %v158
    %v160 = vmul.f32 %v150, %v159
    %v161 = vmul.f32 %v151, %v159
    %v162 = vmul.f32 %v152, %v159
    %v163 = vmul.f32 %v136, %v136
    %v164 = vsub.f32 1.0, %v163
    %vm165 = vcmp.gt.f32.partialorder %v164, 1e-12
    %v166 = vmax.f32 %v164, 1e-12
    %v167 = vrsqrt.pop %v166
    %v168 = vsel %vm165, %v167, 0.0
    %v169 = vmul.f32 %v137, %v168
    %v170 = vmul.f32 %v138, %v168
    %v171 = vmul.f32 %v139, %v168
    %v172 = vmul.f32 %v169, %v169
    %v173 = vmul.f32 %v170, %v170
    %v174 = vadd.f32 %v172, %v173
    %v175 = vmul.f32 %v171, %v171
    %v176 = vadd.f32 %v174, %v175
    %v177 = vmax.f32 %v176, 1e-24
    %v178 = vrsqrt.pop %v177
    %v179 = vmul.f32 %v169, %v178
    %v180 = vmul.f32 %v170, %v178
    %v181 = vmul.f32 %v171, %v178
    %v182 = vmul.f32 %v140, %v140
    %v183 = vsub.f32 1.0, %v182
    %vm184 = vcmp.gt.f32.partialorder %v183, 1e-12
    %v185 = vmax.f32 %v183, 1e-12
    %v186 = vrsqrt.pop %v185
    %v187 = vsel %vm184, %v186, 0.0
    %v188 = vmul.f32 %v141, %v187
    %v189 = vmul.f32 %v142, %v187
    %v190 = vmul.f32 %v143, %v187
    %v191 = vmul.f32 %v188, %v188
    %v192 = vmul.f32 %v189, %v189
    %v193 = vadd.f32 %v191, %v192
    %v194 = vmul.f32 %v190, %v190
    %v195 = vadd.f32 %v193, %v194
    %v196 = vmax.f32 %v195, 1e-24
    %v197 = vrsqrt.pop %v196
    %v198 = vmul.f32 %v188, %v197
    %v199 = vmul.f32 %v189, %v197
    %v200 = vmul.f32 %v190, %v197
    %v201 = vmul.f32 %v160, %v160
    %v202 = vmul.f32 %v161, %v161
    %v203 = vadd.f32 %v201, %v202
    %v204 = vmul.f32 %v162, %v162
    %v205 = vadd.f32 %v203, %v204
    %v206 = vsub.f32 %v205, 1.0
    %v207 = vmul.f32 %v179, %v179
    %v208 = vmul.f32 %v180, %v180
    %v209 = vadd.f32 %v207, %v208
    %v210 = vmul.f32 %v181, %v181
    %v211 = vadd.f32 %v209, %v210
    %v212 = vsub.f32 %v211, 1.0
    %v213 = vmul.f32 %v198, %v198
    %v214 = vmul.f32 %v199, %v199
    %v215 = vadd.f32 %v213, %v214
    %v216 = vmul.f32 %v200, %v200
    %v217 = vadd.f32 %v215, %v216
    %v218 = vsub.f32 %v217, 1.0
    %v219 = vmul.f32 %v160, %v179
    %v220 = vmul.f32 %v161, %v180
    %v221 = vadd.f32 %v219, %v220
    %v222 = vmul.f32 %v162, %v181
    %v223 = vadd.f32 %v221, %v222
    %v224 = vmul.f32 %v160, %v198
    %v225 = vmul.f32 %v161, %v199
    %v226 = vadd.f32 %v224, %v225
    %v227 = vmul.f32 %v162, %v200
    %v228 = vadd.f32 %v226, %v227
    %v229 = vmul.f32 %v179, %v198
    %v230 = vmul.f32 %v180, %v199
    %v231 = vadd.f32 %v229, %v230
    %v232 = vmul.f32 %v181, %v200
    %v233 = vadd.f32 %v231, %v232
    %v234 = vmul.f32 %v206, %v206
    %v235 = vmul.f32 %v212, %v212
    %v236 = vadd.f32 %v234, %v235
    %v237 = vmul.f32 %v218, %v218
    %v238 = vadd.f32 %v236, %v237
    %v239 = vmul.f32 %v223, %v223
    %v240 = vmul.f32 %v228, %v228
    %v241 = vadd.f32 %v239, %v240
    %v242 = vmul.f32 %v233, %v233
    %v243 = vadd.f32 %v241, %v242
    %v244 = vmul.f32 %v243, 2.0
    %v245 = vadd.f32 %v238, %v244
    %v246 = vadd.f32 %v131, %v245
    %p247 = scmp.eq.s32.totalorder 0, 0
    // Predicated region
    $region18: #{tpu_custom_call.1} parent=1 // pred_check
      %p248 = pneg %p247
    $region19: #{tpu_custom_call.1} parent=1 // pred_check_branch
      %250 = sbr.rel (%p248) target = $region21
    $region20: #{tpu_custom_call.1} parent=1 // pred_region
      %251 = vst [vmem:[#allocation7] sm:$0xff] 0.0
    $region21: #{tpu_custom_call.1} parent=1 // pred_fallthru
      _
    %s252 = sadd.s32 0, 0
    %s253 = smul.u32 %s252, 8
    %v254 = vlaneseq
    %v255 = vshrl.u32 %v254, 7
    %v256 = vlaneseq
    %v257 = vand.u32 %v256, 127
    %v258 = vstv %s253
    %v259 = vadd.s32 %v258, %v255
    %v260 = vmul.u32 %v259, 128
    %v261 = vadd.s32 %v260, %v257
    %vm262 = vcmp.lt.s32.totalorder %v261, 8
    %v263 = vsel %vm262, %v246, 0.0
    %v264 = vadd.f32 %v263, 0.0
    %v265 = vld [vmem:[#allocation7] sm:$0xff]
    %v266 = vadd.f32 %v265, %v264
    %267 = vst [vmem:[#allocation7] sm:$0xff] %v266
    // Predicated region
    $region22: #{tpu_custom_call.1} parent=1 // pred_check
      _
    $region23: #{tpu_custom_call.1} parent=1 // pred_check_branch
      %269 = sbr.rel (0) target = $region25
    $region24: #{tpu_custom_call.1} parent=1 // pred_region
      %s271 = ssub.s32 128, 128
      %272 = vsyncadd [#allocation4], %s271
      %s274 = sshll.u32 [#allocation7], 4
      %s275 = int_to_ptr.vmem [resolvable:$true] %s274
      %277 = dma.vmem_to_hbm [thread:$0]  %s275, 128, %s2, [#allocation4]
    $region25: #{tpu_custom_call.1} parent=1 // pred_fallthru
      _
    // Predicated region
    $region26: #{tpu_custom_call.1} parent=1 // pred_check
      _
    $region27: #{tpu_custom_call.1} parent=1 // pred_check_branch
      %279 = sbr.rel (0) target = $region29
    $region28: #{tpu_custom_call.1} parent=1 // pred_region
      %280 = dma.done [#allocation4], 128
    $region29: #{tpu_custom_call.1} parent=1 // pred_fallthru
      _
    %281 = vsyncpa [#allocation3], 1
    %282 = vsyncpa [#allocation6], 1
    %283 = vsyncpa [#allocation4], 1

</llo_original>
